<compile_context>
chip_gen: v7x
topology: tpu7x:2x2x1
jax: 0.10.0
libtpu: 0.0.40
codegen_flags: <defaults>
</compile_context>

<pallas_src>
import functools

import jax
import jax.numpy as jnp
from jax.experimental import pallas as pl
from jax.experimental.pallas import tpu as pltpu

PAD = 128       # lane-padded hidden width (layers 1 and 2)
TB_MAX = 1024   # default max batch-tile rows (fits default scoped VMEM everywhere)


def _round_up(n, m):
    return ((n + m - 1) // m) * m


def _act_dtype_for_backend():
    """bf16 activations/tanh on chips with a bf16 VPU/EUP (v6e, v7x); f32 otherwise."""
    try:
        kind = jax.devices()[0].device_kind.lower()
    except Exception:
        return jnp.float32
    for old in ("v2", "v3", "v4", "v5"):
        if old in kind:
            return jnp.float32
    return jnp.bfloat16


def _make_disc_kernel(act_dtype):
    def _disc_kernel(x_ref, w1_ref, b1_ref, w2_ref, b2_ref, w3_ref, b3_ref, o_ref):
        # x_ref: (TB, D) caller dtype   w1: (D, PAD) bf16   w2: (PAD, PAD) bf16
        # b1/b2: (1, PAD) f32   w3: (1, PAD) f32   b3: (1, 1) f32   o: (TB, 1) f32
        # Cast to bf16 in-kernel (VPU pass hidden under the x DMA) — the wrapper
        # never materializes a casted/padded copy of x in HBM.
        x = x_ref[...].astype(jnp.bfloat16)
        z1 = jnp.dot(x, w1_ref[...], preferred_element_type=jnp.float32) + b1_ref[...]
        h1 = jnp.tanh(z1.astype(act_dtype)).astype(jnp.bfloat16)          # [TB, PAD]
        z2 = jnp.dot(h1, w2_ref[...], preferred_element_type=jnp.float32) + b2_ref[...]
        h2 = jnp.tanh(z2.astype(act_dtype)).astype(jnp.float32)           # [TB, PAD]
        # 3 -> 1 layer as an elementwise multiply + lane reduce (only lanes 0..2
        # of w3 are nonzero; padding lanes contribute tanh(0)*0 = 0).
        z = jnp.sum(h2 * w3_ref[...], axis=-1, keepdims=True) + b3_ref[...]   # [TB, 1]
        o_ref[...] = jax.nn.sigmoid(z)
    return _disc_kernel


def init_discriminator_params(key, img_dim):
    """Deterministic synthetic params, PyTorch shapes (w: [out, in], b: [out])."""
    ks = jax.random.split(key, 6)

    def uniform(k, shape, fan_in):
        bound = 1.0 / jnp.sqrt(fan_in)
        return jax.random.uniform(k, shape, jnp.float32, -bound, bound)

    return {
        "w1": uniform(ks[0], (5, img_dim), img_dim),
        "b1": uniform(ks[1], (5,), img_dim),
        "w2": uniform(ks[2], (3, 5), 5),
        "b2": uniform(ks[3], (3,), 5),
        "w3": uniform(ks[4], (1, 3), 3),
        "b3": uniform(ks[5], (1,), 3),
    }


def prepare_discriminator_params(params):
    """One-time prep (hoisted out of the per-call path; call once per param update).

    Transposes to [in, out], zero-pads hidden dims to PAD lanes, casts the big
    weights to bf16.  Zero padding is mathematically inert (tanh(0)=0 and zero
    weight rows/cols contribute nothing).
    """
    w1 = params["w1"].T                                   # [D, 5]
    w2 = params["w2"].T                                   # [5, 3]
    D = w1.shape[0]

    w1p = jnp.zeros((D, PAD), jnp.float32).at[:, :5].set(w1).astype(jnp.bfloat16)
    b1p = jnp.zeros((1, PAD), jnp.float32).at[0, :5].set(params["b1"])
    w2p = jnp.zeros((PAD, PAD), jnp.float32).at[:5, :3].set(w2).astype(jnp.bfloat16)
    b2p = jnp.zeros((1, PAD), jnp.float32).at[0, :3].set(params["b2"])
    w3p = jnp.zeros((1, PAD), jnp.float32).at[0, :3].set(params["w3"][0])   # row layout
    b3p = params["b3"].reshape(1, 1).astype(jnp.float32)
    return (w1p, b1p, w2p, b2p, w3p, b3p)


@functools.partial(jax.jit, static_argnames=("tb_max", "vmem_limit_bytes"))
def discriminator_forward(padded_params, x, *, tb_max=TB_MAX, vmem_limit_bytes=None):
    """x: [B, img_dim] (f32 or bf16) -> [B, 1] float32 sigmoid scores."""
    w1p, b1p, w2p, b2p, w3p, b3p = padded_params
    B, D = x.shape
    assert w1p.shape[0] == D, (w1p.shape, D)

    # Batch tile: >= 2 grid steps whenever the batch allows (feeds both v7x
    # TensorCores via the "parallel" axis), multiple of 16 sublanes, capped by
    # tb_max.  Tiny batches use a single full-extent block.
    if B <= 8:
        TB = B
    else:
        TB = min(int(tb_max), _round_up(pl.cdiv(B, 2), 16))
        TB = max(16, (TB // 16) * 16)
    num_tiles = pl.cdiv(B, TB)

    cost = pl.CostEstimate(
        flops=2 * B * (D * PAD + PAD * PAD + PAD),
        transcendentals=B * (2 * PAD + 1),
        bytes_accessed=(B * D * x.dtype.itemsize           # x (native dtype, read once)
                        + B * 4                            # output (f32, 1 lane)
                        + (D * PAD + PAD * PAD) * 2        # bf16 weights
                        + (3 * PAD + 2) * 4),              # f32 biases + w3 row
    )

    cp_kwargs = dict(dimension_semantics=("parallel",))
    if vmem_limit_bytes is not None:
        cp_kwargs["vmem_limit_bytes"] = int(vmem_limit_bytes)

    out = pl.pallas_call(
        _make_disc_kernel(_act_dtype_for_backend()),
        out_shape=jax.ShapeDtypeStruct((B, 1), jnp.float32),
        grid=(num_tiles,),
        in_specs=[
            pl.BlockSpec((TB, D), lambda i: (i, 0)),       # x: streamed per tile (native dtype)
            pl.BlockSpec((D, PAD), lambda i: (0, 0)),      # w1: resident
            pl.BlockSpec((1, PAD), lambda i: (0, 0)),      # b1
            pl.BlockSpec((PAD, PAD), lambda i: (0, 0)),    # w2
            pl.BlockSpec((1, PAD), lambda i: (0, 0)),      # b2
            pl.BlockSpec((1, PAD), lambda i: (0, 0)),      # w3 (row layout)
            pl.BlockSpec((1, 1), lambda i: (0, 0)),        # b3
        ],
        # Ragged tail: the last (partial) output block's out-of-range rows are
        # masked on store, so no wrapper-side pad / slice is needed.
        out_specs=pl.BlockSpec((TB, 1), lambda i: (i, 0)),
        compiler_params=pltpu.CompilerParams(**cp_kwargs),
        cost_estimate=cost,
    )(x, w1p, b1p, w2p, b2p, w3p, b3p)

    return out


def discriminator_reference(params, x):
    """Pure-JAX f32 reference matching the PyTorch forward exactly."""
    h1 = jnp.tanh(x @ params["w1"].T + params["b1"])
    h2 = jnp.tanh(h1 @ params["w2"].T + params["b2"])
    return jax.nn.sigmoid(h2 @ params["w3"].T + params["b3"])


if __name__ == "__main__":
    key = jax.random.PRNGKey(0)
    k_param, k_x, k_param2, k_x2 = jax.random.split(key, 4)

    # Small single-tile test (block equals full batch extent).
    batch, img_dim = 2, 32
    params = init_discriminator_params(k_param, img_dim)
    padded = prepare_discriminator_params(params)       # one-time, outside the call path
    x = jax.random.normal(k_x, (batch, img_dim), jnp.float32)

    out = jax.block_until_ready(discriminator_forward(padded, x))
    ref = discriminator_reference(params, x)
    assert out.shape == (batch, 1), out.shape
    # bf16 weights / in-kernel bf16 cast -> loosened tolerance vs the f32 reference.
    assert jnp.allclose(out, ref, atol=2e-2, rtol=2e-2), (out, ref)

    # Multi-tile + ragged-tail test: B % TB != 0 exercises the masked partial
    # boundary block (no wrapper pad, no output slice).
    batch2, img_dim2 = 50, 64
    params2 = init_discriminator_params(k_param2, img_dim2)
    padded2 = prepare_discriminator_params(params2)
    x2 = jax.random.normal(k_x2, (batch2, img_dim2), jnp.float32)

    out2 = jax.block_until_ready(discriminator_forward(padded2, x2, tb_max=16))
    ref2 = discriminator_reference(params2, x2)
    assert out2.shape == (batch2, 1), out2.shape
    assert jnp.allclose(out2, ref2, atol=2e-2, rtol=2e-2), float(
        jnp.max(jnp.abs(out2 - ref2))
    )

    print("KERNEL_OK")
</pallas_src>

<mosaic_0001>
module attributes {stable_mosaic.version = 11 : i64} {
  func.func @_disc_kernel(%arg0: i32, %arg1: memref<2x32xf32, #tpu.memory_space<vmem>>, %arg2: memref<32x128xbf16, #tpu.memory_space<vmem>>, %arg3: memref<1x128xf32, #tpu.memory_space<vmem>>, %arg4: memref<128x128xbf16, #tpu.memory_space<vmem>>, %arg5: memref<1x128xf32, #tpu.memory_space<vmem>>, %arg6: memref<1x128xf32, #tpu.memory_space<vmem>>, %arg7: memref<1x1xf32, #tpu.memory_space<vmem>>, %arg8: memref<2x1xf32, #tpu.memory_space<vmem>>) attributes {dimension_semantics = [#tpu.dimension_semantics<parallel>], iteration_bounds = array<i64: 1>, scalar_prefetch = 0 : i64, scratch_operands = 0 : i64, tpu.core_type = #tpu.core_type<tc>, window_params = [{transform_indices = @transform_0, window_bounds = array<i64: 2, 32>}, {pipeline_mode = #tpu.pipeline_mode<synchronous>, transform_indices = @transform_1, window_bounds = array<i64: 32, 128>}, {pipeline_mode = #tpu.pipeline_mode<synchronous>, transform_indices = @transform_2, window_bounds = array<i64: 1, 128>}, {pipeline_mode = #tpu.pipeline_mode<synchronous>, transform_indices = @transform_3, window_bounds = array<i64: 128, 128>}, {pipeline_mode = #tpu.pipeline_mode<synchronous>, transform_indices = @transform_4, window_bounds = array<i64: 1, 128>}, {pipeline_mode = #tpu.pipeline_mode<synchronous>, transform_indices = @transform_5, window_bounds = array<i64: 1, 128>}, {pipeline_mode = #tpu.pipeline_mode<synchronous>, transform_indices = @transform_6, window_bounds = array<i64: 1, 1>}, {transform_indices = @transform_7, window_bounds = array<i64: 2, 1>}]} {
    %c0 = arith.constant 0 : index
    %c0_0 = arith.constant 0 : index
    %0 = vector.load %arg1[%c0, %c0_0] : memref<2x32xf32, #tpu.memory_space<vmem>>, vector<2x32xf32>
    %1 = arith.truncf %0 : vector<2x32xf32> to vector<2x32xbf16>
    %c0_1 = arith.constant 0 : index
    %c0_2 = arith.constant 0 : index
    %2 = vector.load %arg2[%c0_1, %c0_2] : memref<32x128xbf16, #tpu.memory_space<vmem>>, vector<32x128xbf16>
    %cst = arith.constant dense<0.000000e+00> : vector<2x128xf32>
    %3 = tpu.matmul %1, %2, %cst {dimension_numbers = #tpu.dot_dimension_numbers<[1], [0], [0], [1], [0, 0, 1, 1], [], []>} : vector<2x32xbf16>, vector<32x128xbf16>, vector<2x128xf32> -> vector<2x128xf32>
    %c0_3 = arith.constant 0 : index
    %c0_4 = arith.constant 0 : index
    %4 = vector.load %arg3[%c0_3, %c0_4] : memref<1x128xf32, #tpu.memory_space<vmem>>, vector<1x128xf32>
    %5 = vector.broadcast %4 : vector<1x128xf32> to vector<2x128xf32>
    %6 = arith.addf %3, %5 : vector<2x128xf32>
    %7 = arith.truncf %6 : vector<2x128xf32> to vector<2x128xbf16>
    %8 = math.tanh %7 : vector<2x128xbf16>
    %c0_5 = arith.constant 0 : index
    %c0_6 = arith.constant 0 : index
    %9 = vector.load %arg4[%c0_5, %c0_6] : memref<128x128xbf16, #tpu.memory_space<vmem>>, vector<128x128xbf16>
    %cst_7 = arith.constant dense<0.000000e+00> : vector<2x128xf32>
    %10 = tpu.matmul %8, %9, %cst_7 {dimension_numbers = #tpu.dot_dimension_numbers<[1], [0], [0], [1], [0, 0, 1, 1], [], []>} : vector<2x128xbf16>, vector<128x128xbf16>, vector<2x128xf32> -> vector<2x128xf32>
    %c0_8 = arith.constant 0 : index
    %c0_9 = arith.constant 0 : index
    %11 = vector.load %arg5[%c0_8, %c0_9] : memref<1x128xf32, #tpu.memory_space<vmem>>, vector<1x128xf32>
    %12 = vector.broadcast %11 : vector<1x128xf32> to vector<2x128xf32>
    %13 = arith.addf %10, %12 : vector<2x128xf32>
    %14 = arith.truncf %13 : vector<2x128xf32> to vector<2x128xbf16>
    %15 = math.tanh %14 : vector<2x128xbf16>
    %16 = arith.extf %15 : vector<2x128xbf16> to vector<2x128xf32>
    %c0_10 = arith.constant 0 : index
    %c0_11 = arith.constant 0 : index
    %17 = vector.load %arg6[%c0_10, %c0_11] : memref<1x128xf32, #tpu.memory_space<vmem>>, vector<1x128xf32>
    %18 = vector.broadcast %17 : vector<1x128xf32> to vector<2x128xf32>
    %19 = arith.mulf %16, %18 : vector<2x128xf32>
    %cst_12 = arith.constant dense<0.000000e+00> : vector<2xf32>
    %20 = vector.multi_reduction <add>, %19, %cst_12 [1] : vector<2x128xf32> to vector<2xf32>
    %21 = vector.shape_cast %20 : vector<2xf32> to vector<2x1xf32>
    %c0_13 = arith.constant 0 : index
    %c0_14 = arith.constant 0 : index
    %22 = vector.load %arg7[%c0_13, %c0_14] : memref<1x1xf32, #tpu.memory_space<vmem>>, vector<1x1xf32>
    %23 = vector.broadcast %22 : vector<1x1xf32> to vector<2x1xf32>
    %24 = arith.addf %21, %23 : vector<2x1xf32>
    %25 = arith.negf %24 : vector<2x1xf32>
    %26 = math.exp %25 : vector<2x1xf32>
    %cst_15 = arith.constant 1.000000e+00 : f32
    %27 = vector.broadcast %cst_15 : f32 to vector<2x1xf32>
    %28 = arith.addf %27, %26 : vector<2x1xf32>
    %29 = arith.divf %27, %28 : vector<2x1xf32>
    %c0_16 = arith.constant 0 : index
    %c0_17 = arith.constant 0 : index
    %30 = vector.load %arg8[%c0_16, %c0_17] : memref<2x1xf32, #tpu.memory_space<vmem>>, vector<2x1xf32>
    tpu.vector_store %arg8[%c0_16, %c0_17], %29 {strides = array<i32>} : memref<2x1xf32, #tpu.memory_space<vmem>>, vector<2x1xf32>,
    return
  }
  func.func @transform_0(%arg0: i32) -> (i32, i32) {
    %c0_i32 = arith.constant 0 : i32
    %c0_i32_0 = arith.constant 0 : i32
    return %arg0, %c0_i32 : i32, i32
  }
  func.func @transform_1(%arg0: i32) -> (i32, i32) {
    %c0_i32 = arith.constant 0 : i32
    %c0_i32_0 = arith.constant 0 : i32
    %c0_i32_1 = arith.constant 0 : i32
    return %c0_i32, %c0_i32_0 : i32, i32
  }
  func.func @transform_2(%arg0: i32) -> (i32, i32) {
    %c0_i32 = arith.constant 0 : i32
    %c0_i32_0 = arith.constant 0 : i32
    %c0_i32_1 = arith.constant 0 : i32
    return %c0_i32, %c0_i32_0 : i32, i32
  }
  func.func @transform_3(%arg0: i32) -> (i32, i32) {
    %c0_i32 = arith.constant 0 : i32
    %c0_i32_0 = arith.constant 0 : i32
    %c0_i32_1 = arith.constant 0 : i32
    return %c0_i32, %c0_i32_0 : i32, i32
  }
  func.func @transform_4(%arg0: i32) -> (i32, i32) {
    %c0_i32 = arith.constant 0 : i32
    %c0_i32_0 = arith.constant 0 : i32
    %c0_i32_1 = arith.constant 0 : i32
    return %c0_i32, %c0_i32_0 : i32, i32
  }
  func.func @transform_5(%arg0: i32) -> (i32, i32) {
    %c0_i32 = arith.constant 0 : i32
    %c0_i32_0 = arith.constant 0 : i32
    %c0_i32_1 = arith.constant 0 : i32
    return %c0_i32, %c0_i32_0 : i32, i32
  }
  func.func @transform_6(%arg0: i32) -> (i32, i32) {
    %c0_i32 = arith.constant 0 : i32
    %c0_i32_0 = arith.constant 0 : i32
    %c0_i32_1 = arith.constant 0 : i32
    return %c0_i32, %c0_i32_0 : i32, i32
  }
  func.func @transform_7(%arg0: i32) -> (i32, i32) {
    %c0_i32 = arith.constant 0 : i32
    %c0_i32_0 = arith.constant 0 : i32
    return %arg0, %c0_i32 : i32, i32
  }
}

</mosaic_0001>

<llo_original>
// kernel: discriminator_forward.1
$region0: #{discriminator_forward.1}
  #allocation0 [shape = 'u32[]', space=smem, size = 0x4, offset = 0x4, fixed_abs, tag = 'smem constant byte address 0x4 - core index']
  #allocation1 [shape = 'u32[144,128]{1,0:T(1,128)}', space=vmem, size = 0x12000, scoped, tag = 'internal scratch']
  #allocation2 [shape = 'f32[1,1]{1,0:T(1,128)S(1)}', space=vmem, size = 0x200, scoped, tag = 'scoped memory for discriminator_forward.1']
  %s0 = inlined_call_operand.vmem [shape: f32[2,32], index: 0, kind: input, shape index: {}]
  %s1 = inlined_call_operand.hbm [shape: bf16[32,128], index: 1, kind: input, shape index: {}]
  %s2 = inlined_call_operand.vmem [shape: f32[1,128], index: 2, kind: input, shape index: {}]
  %s3 = inlined_call_operand.hbm [shape: bf16[128,128], index: 3, kind: input, shape index: {}]
  %s4 = inlined_call_operand.vmem [shape: f32[1,128], index: 4, kind: input, shape index: {}]
  %s5 = inlined_call_operand.vmem [shape: f32[1,128], index: 5, kind: input, shape index: {}]
  %s6 = inlined_call_operand.<no memory space> [shape: f32[1,1], index: 6, kind: input, shape index: {}]
  %s7 = inlined_call_operand.vmem [shape: f32[2,1], index: 7, kind: output, shape index: {}]
  %s8 = sld [smem:[#allocation0]]
  $region46: #{discriminator_forward.1} parent=0
    _
  %s10 = ssub.s32 1, %s8
  %s11 = scalar_select 0, %s10, %s8
  %v12 = vstv %s6
  %13 = vst [vmem:[#allocation2] sm:$0x1] %v12
  $region1: #{discriminator_forward.1} parent=0
    #allocation3 [shape = 'u8[8192]{0}', space=vmem, size = 0x2000, scoped, tag = 'input window, operand 1, single buffered']
    #allocation4 [shape = 's32[1]{0}', space=sflag, size = 0x4, scoped, tag = 'scoped memory for discriminator_forward.1']
    #allocation5 [shape = 'u8[32768]{0}', space=vmem, size = 0x8000, scoped, tag = 'input window, operand 3, single buffered']
    #allocation6 [shape = 's32[1]{0}', space=sflag, size = 0x4, scoped, tag = 'scoped memory for discriminator_forward.1']
    %14 = vsyncpa [#allocation4], 0
    %15 = vsyncpa [#allocation6], 0
    // Predicated region
    $region2: #{discriminator_forward.1} parent=1 // pred_check
      _
    $region3: #{discriminator_forward.1} parent=1 // pred_check_branch
      %17 = sbr.rel (0) target = $region5
    $region4: #{discriminator_forward.1} parent=1 // pred_region
      _
    $region5: #{discriminator_forward.1} parent=1 // pred_fallthru
      _
    // Predicated region
    $region6: #{discriminator_forward.1} parent=1 // pred_check
      _
    $region7: #{discriminator_forward.1} parent=1 // pred_check_branch
      %19 = sbr.rel (0) target = $region9
    $region8: #{discriminator_forward.1} parent=1 // pred_region
      %s21 = ssub.s32 256, 256
      %22 = vsyncadd [#allocation4], %s21
      %s23 = sshll.u32 [#allocation3], 4
      %s24 = int_to_ptr.vmem [resolvable:$true] %s23
      %29 = dma.hbm_to_vmem [thread:$0]  %s1, 256, %s24, [#allocation4], 64, 64, 4
    $region9: #{discriminator_forward.1} parent=1 // pred_fallthru
      _
    // Predicated region
    $region10: #{discriminator_forward.1} parent=1 // pred_check
      _
    $region11: #{discriminator_forward.1} parent=1 // pred_check_branch
      %31 = sbr.rel (0) target = $region13
    $region12: #{discriminator_forward.1} parent=1 // pred_region
      _
    $region13: #{discriminator_forward.1} parent=1 // pred_fallthru
      _
    // Predicated region
    $region14: #{discriminator_forward.1} parent=1 // pred_check
      _
    $region15: #{discriminator_forward.1} parent=1 // pred_check_branch
      %33 = sbr.rel (0) target = $region17
    $region16: #{discriminator_forward.1} parent=1 // pred_region
      %s35 = ssub.s32 1024, 1024
      %36 = vsyncadd [#allocation6], %s35
      %s37 = sshll.u32 [#allocation5], 4
      %s38 = int_to_ptr.vmem [resolvable:$true] %s37
      %43 = dma.hbm_to_vmem [thread:$0]  %s3, 1024, %s38, [#allocation6], 64, 64, 4
    $region17: #{discriminator_forward.1} parent=1 // pred_fallthru
      _
    // Predicated region
    $region18: #{discriminator_forward.1} parent=1 // pred_check
      _
    $region19: #{discriminator_forward.1} parent=1 // pred_check_branch
      %45 = sbr.rel (0) target = $region21
    $region20: #{discriminator_forward.1} parent=1 // pred_region
      _
    $region21: #{discriminator_forward.1} parent=1 // pred_fallthru
      _
    // Predicated region
    $region22: #{discriminator_forward.1} parent=1 // pred_check
      _
    $region23: #{discriminator_forward.1} parent=1 // pred_check_branch
      %47 = sbr.rel (0) target = $region25
    $region24: #{discriminator_forward.1} parent=1 // pred_region
      _
    $region25: #{discriminator_forward.1} parent=1 // pred_fallthru
      _
    // Predicated region
    $region26: #{discriminator_forward.1} parent=1 // pred_check
      _
    $region27: #{discriminator_forward.1} parent=1 // pred_check_branch
      %49 = sbr.rel (0) target = $region29
    $region28: #{discriminator_forward.1} parent=1 // pred_region
      _
    $region29: #{discriminator_forward.1} parent=1 // pred_fallthru
      _
    // Predicated region
    $region30: #{discriminator_forward.1} parent=1 // pred_check
      _
    $region31: #{discriminator_forward.1} parent=1 // pred_check_branch
      %51 = sbr.rel (0) target = $region33
    $region32: #{discriminator_forward.1} parent=1 // pred_region
      %52 = dma.done [#allocation4], 256
    $region33: #{discriminator_forward.1} parent=1 // pred_fallthru
      _
    // Predicated region
    $region34: #{discriminator_forward.1} parent=1 // pred_check
      _
    $region35: #{discriminator_forward.1} parent=1 // pred_check_branch
      %54 = sbr.rel (0) target = $region37
    $region36: #{discriminator_forward.1} parent=1 // pred_region
      %55 = dma.done [#allocation6], 1024
    $region37: #{discriminator_forward.1} parent=1 // pred_fallthru
      _
    %v57 = vld [vmem:[%s0] sm:$0x3]
    %v58 = vpack.c.bf16 %v57, %v57
    %v59 = vld [vmem:[#allocation3] sm:$0xf]
    %v60 = vld [vmem:[#allocation3 + $0x4] sm:$0xf]
    %v61 = vld [vmem:[#allocation3 + $0x8] sm:$0xf]
    %v62 = vld [vmem:[#allocation3 + $0xc] sm:$0xf]
    %v63 = vld [vmem:[%s2] sm:$0x1]
    %v65 = vlaneseq
    %v66 = vshrl.u32 %v65, 7
    %v67 = vsub.s32 0, %v66
    %v68 = vrot.slane %v63, %v67
    %v74 = vunpack.c.l.b16 %v59
    %v75 = vunpack.c.l.b16 %v60
    %v76 = vunpack.c.l.b16 %v61
    %v77 = vunpack.c.l.b16 %v62
    %v78 = vpack.c.b16 %v75, %v74
    %v79 = vpack.c.b16 %v77, %v76
    %vm82 = vcmask 261120
    %v84 = vsel %vm82, %v58, 0
    %86 = vmatprep.subr.bf16.mxu0 0
    %87 = vmatpush1.bf16.msra.mxu0 %v78
    %88 = vmatprep.subr.bf16.mxu0 0
    %89 = vmatpush1.bf16.msra.mxu0 %v79
    %90 = vmatprep.subr.bf16.mxu0 0
    %91 = vmatpush1.bf16.msra.mxu0 0
    %92 = vmatprep.subr.bf16.mxu0 0
    %93 = vmatpush1.bf16.msra.mxu0 0
    %94 = vmatprep.subr.bf16.mxu0 0
    %95 = vmatpush1.bf16.msra.mxu0 0
    %96 = vmatprep.subr.bf16.mxu0 0
    %97 = vmatpush1.bf16.msra.mxu0 0
    %98 = vmatprep.subr.bf16.mxu0 0
    %99 = vmatpush1.bf16.msra.mxu0 0
    %100 = vmatprep.subr.bf16.mxu0 0
    %101 = vmatpush1.bf16.msra.mxu0 0
    %102 = vmatprep.subr.bf16.mxu0 0
    %103 = vmatpush1.bf16.msra.mxu0 0
    %104 = vmatprep.subr.bf16.mxu0 0
    %105 = vmatpush1.bf16.msra.mxu0 0
    %106 = vmatprep.subr.bf16.mxu0 0
    %107 = vmatpush1.bf16.msra.mxu0 0
    %108 = vmatprep.subr.bf16.mxu0 0
    %109 = vmatpush1.bf16.msra.mxu0 0
    %110 = vmatprep.subr.bf16.mxu0 0
    %111 = vmatpush1.bf16.msra.mxu0 0
    %112 = vmatprep.subr.bf16.mxu0 0
    %113 = vmatpush1.bf16.msra.mxu0 0
    %114 = vmatprep.subr.bf16.mxu0 0
    %115 = vmatpush1.bf16.msra.mxu0 0
    %116 = vmatprep.subr.bf16.mxu0 0
    %117 = vmatpush1.bf16.msra.mxu0 0
    %118 = vmatprep.mubr.bf16.mxu0 0
    %119 = vmatmul.mubr.bf16.gmra.mrb[0].mxu0 %v84
    %v120 = vpop.f32.mrb[0].mxu0
    %v121 = vadd.f32 %v68, %v120
    %v122 = vpop.f32.mrb[0].mxu0
    %v123 = vpop.f32.mrb[0].mxu0
    %v124 = vpop.f32.mrb[0].mxu0
    %125 = vdwg.mxu0
    %v126 = vpack.c.bf16 %v121, %v121
    %v127 = vtanh.bf16.pop %v126
    %v128 = vld [vmem:[#allocation5] sm:$0xf]
    %v129 = vld [vmem:[#allocation5 + $0x4] sm:$0xf]
    %v130 = vld [vmem:[#allocation5 + $0x8] sm:$0xf]
    %v131 = vld [vmem:[#allocation5 + $0xc] sm:$0xf]
    %v132 = vld [vmem:[#allocation5 + $0x10] sm:$0xf]
    %v133 = vld [vmem:[#allocation5 + $0x14] sm:$0xf]
    %v134 = vld [vmem:[#allocation5 + $0x18] sm:$0xf]
    %v135 = vld [vmem:[#allocation5 + $0x1c] sm:$0xf]
    %v136 = vld [vmem:[#allocation5 + $0x20] sm:$0xf]
    %v137 = vld [vmem:[#allocation5 + $0x24] sm:$0xf]
    %v138 = vld [vmem:[#allocation5 + $0x28] sm:$0xf]
    %v139 = vld [vmem:[#allocation5 + $0x2c] sm:$0xf]
    %v140 = vld [vmem:[#allocation5 + $0x30] sm:$0xf]
    %v141 = vld [vmem:[#allocation5 + $0x34] sm:$0xf]
    %v142 = vld [vmem:[#allocation5 + $0x38] sm:$0xf]
    %v143 = vld [vmem:[#allocation5 + $0x3c] sm:$0xf]
    %v144 = vld [vmem:[%s4] sm:$0x1]
    %v146 = vlaneseq
    %v147 = vshrl.u32 %v146, 7
    %v148 = vsub.s32 0, %v147
    %v149 = vrot.slane %v144, %v148
    %v167 = vunpack.c.l.b16 %v128
    %v168 = vunpack.c.l.b16 %v129
    %v169 = vunpack.c.l.b16 %v130
    %v170 = vunpack.c.l.b16 %v131
    %v171 = vunpack.c.l.b16 %v132
    %v172 = vunpack.c.l.b16 %v133
    %v173 = vunpack.c.l.b16 %v134
    %v174 = vunpack.c.l.b16 %v135
    %v175 = vunpack.c.l.b16 %v136
    %v176 = vunpack.c.l.b16 %v137
    %v177 = vunpack.c.l.b16 %v138
    %v178 = vunpack.c.l.b16 %v139
    %v179 = vunpack.c.l.b16 %v140
    %v180 = vunpack.c.l.b16 %v141
    %v181 = vunpack.c.l.b16 %v142
    %v182 = vunpack.c.l.b16 %v143
    %v183 = vpack.c.b16 %v168, %v167
    %v184 = vpack.c.b16 %v170, %v169
    %v185 = vpack.c.b16 %v172, %v171
    %v186 = vpack.c.b16 %v174, %v173
    %v187 = vpack.c.b16 %v176, %v175
    %v188 = vpack.c.b16 %v178, %v177
    %v189 = vpack.c.b16 %v180, %v179
    %v190 = vpack.c.b16 %v182, %v181
    %199 = vmatprep.subr.bf16.mxu0 0
    %200 = vmatpush1.bf16.msra.mxu0 %v183
    %201 = vmatprep.subr.bf16.mxu0 0
    %202 = vmatpush1.bf16.msra.mxu0 %v184
    %203 = vmatprep.subr.bf16.mxu0 0
    %204 = vmatpush1.bf16.msra.mxu0 %v185
    %205 = vmatprep.subr.bf16.mxu0 0
    %206 = vmatpush1.bf16.msra.mxu0 %v186
    %207 = vmatprep.subr.bf16.mxu0 0
    %208 = vmatpush1.bf16.msra.mxu0 %v187
    %209 = vmatprep.subr.bf16.mxu0 0
    %210 = vmatpush1.bf16.msra.mxu0 %v188
    %211 = vmatprep.subr.bf16.mxu0 0
    %212 = vmatpush1.bf16.msra.mxu0 %v189
    %213 = vmatprep.subr.bf16.mxu0 0
    %214 = vmatpush1.bf16.msra.mxu0 %v190
    %215 = vmatprep.subr.bf16.mxu0 0
    %216 = vmatpush1.bf16.msra.mxu0 0
    %217 = vmatprep.subr.bf16.mxu0 0
    %218 = vmatpush1.bf16.msra.mxu0 0
    %219 = vmatprep.subr.bf16.mxu0 0
    %220 = vmatpush1.bf16.msra.mxu0 0
    %221 = vmatprep.subr.bf16.mxu0 0
    %222 = vmatpush1.bf16.msra.mxu0 0
    %223 = vmatprep.subr.bf16.mxu0 0
    %224 = vmatpush1.bf16.msra.mxu0 0
    %225 = vmatprep.subr.bf16.mxu0 0
    %226 = vmatpush1.bf16.msra.mxu0 0
    %227 = vmatprep.subr.bf16.mxu0 0
    %228 = vmatpush1.bf16.msra.mxu0 0
    %229 = vmatprep.subr.bf16.mxu0 0
    %230 = vmatpush1.bf16.msra.mxu0 0
    %231 = vmatprep.mubr.bf16.mxu0 0
    %232 = vmatmul.mubr.bf16.gmra.mrb[0].mxu0 %v127
    %v233 = vpop.f32.mrb[0].mxu0
    %v234 = vadd.f32 %v149, %v233
    %v235 = vpop.f32.mrb[0].mxu0
    %v236 = vpop.f32.mrb[0].mxu0
    %v237 = vpop.f32.mrb[0].mxu0
    %238 = vdwg.mxu0
    %v239 = vpack.c.bf16 %v234, %v234
    %v240 = vtanh.bf16.pop %v239
    %v241 = vunpack.c.l.bf16 %v240
    %v242 = vld [vmem:[%s5] sm:$0x1]
    %v244 = vlaneseq
    %v245 = vshrl.u32 %v244, 7
    %v246 = vsub.s32 0, %v245
    %v247 = vrot.slane %v242, %v246
    %v249 = vmul.f32 %v241, %v247
    %vm250 = vcmask 1041408
    %v251 = vsel %vm250, %v249, 0.0
    %252 = vadd.xlane.f32.xlu0 %v251
    %v253 = vpop.xlane.xlu0 %252
    %v254 = vld [vmem:[#allocation2] sm:$0x1]
    %v256 = vlaneseq
    %v257 = vshrl.u32 %v256, 7
    %v258 = vsub.s32 0, %v257
    %v259 = vrot.slane %v254, %v258
    %v261 = vadd.f32 %v253, %v259
    %v262 = vxor.u32 %v261, 2147483648
    %v263 = vmul.f32 %v262, 1.442695
    %v264 = vpow.pop %v263
    %v265 = vadd.f32 %v264, 1.0
    %v266 = vrcp.pop %v265
    %v267 = vmul.f32 1.0, %v266
    %vm268 = vcmask 1024
    %269 = vst.msk [vmem:[%s7] sm:$0x3] %vm268, %v267
    // Predicated region
    $region38: #{discriminator_forward.1} parent=1 // pred_check
      _
    $region39: #{discriminator_forward.1} parent=1 // pred_check_branch
      %271 = sbr.rel (0) target = $region41
    $region40: #{discriminator_forward.1} parent=1 // pred_region
      _
    $region41: #{discriminator_forward.1} parent=1 // pred_fallthru
      _
    // Predicated region
    $region42: #{discriminator_forward.1} parent=1 // pred_check
      _
    $region43: #{discriminator_forward.1} parent=1 // pred_check_branch
      %273 = sbr.rel (0) target = $region45
    $region44: #{discriminator_forward.1} parent=1 // pred_region
      _
    $region45: #{discriminator_forward.1} parent=1 // pred_fallthru
      _
    %274 = vsyncpa [#allocation4], 1
    %275 = vsyncpa [#allocation6], 1

</llo_original>
